<compile_context>
chip_gen: v7x
topology: tpu7x:2x2x1
jax: 0.10.0
libtpu: 0.0.40
codegen_flags: <defaults>
</compile_context>

<pallas_src>
import functools

import numpy as np
import jax
import jax.numpy as jnp
from jax import lax
from jax.experimental import pallas as pl
from jax.experimental.pallas import tpu as pltpu


def _col_to_row(col, n):
    """Convert an (n, 1) column into a (1, n) row without an MXU matmul.

    iota-built identity mask + sublane reduce: one vreg of VPU compare/select +
    XLU reduce.  Chosen over jnp.transpose for robust lowering of sub-tile shapes.
    """
    ri = lax.broadcasted_iota(jnp.int32, (n, n), 0)
    ci = lax.broadcasted_iota(jnp.int32, (n, n), 1)
    eye = (ri == ci).astype(col.dtype)
    return jnp.sum(col * eye, axis=0, keepdims=True)  # (1, n)


def att_m_kernel(F_in, H1, H2,
                 scal_ref,   # SMEM (8,): [wq, bq, wk, bk, wv', bv', bo, b_out']
                 x_ref,      # VMEM (B, F_in)
                 slab_ref,   # VMEM (8 + F_in + H1, Hmax) packed params
                 out_ref):   # VMEM (1, B)  lane-dense row
    B = x_ref.shape[0]
    r0 = 8  # weight rows start at an 8-aligned sublane offset

    # ---- unpack the parameter slab (static window loads) ----
    b1 = slab_ref[0:1, 0:H1]                       # (1, H1)
    b2 = slab_ref[1:2, 0:H2]                       # (1, H2)   BN1 folded in
    wout = slab_ref[2:3, 0:H2]                     # (1, H2)   BN2 folded in (row layout)
    w1 = slab_ref[r0:r0 + F_in, 0:H1]              # (F_in, H1)
    w2 = slab_ref[r0 + F_in:r0 + F_in + H1, 0:H2]  # (H1, H2)  BN1 folded in

    wq = scal_ref[0]; bq = scal_ref[1]
    wk = scal_ref[2]; bk = scal_ref[3]
    wv = scal_ref[4]; bv = scal_ref[5]             # wv' = wv*wo, bv' = bv*wo (wo folded)
    bo = scal_ref[6]; bout = scal_ref[7]           # folded output bias

    # ---- MLP trunk: Linear -> ReLU (BatchNorm already folded downstream) ----
    h = jnp.maximum(
        jnp.dot(x_ref[...], w1, preferred_element_type=jnp.float32) + b1, 0.0)
    h = jnp.maximum(
        jnp.dot(h, w2, preferred_element_type=jnp.float32) + b2, 0.0)

    # ---- final Linear(H2 -> 1): broadcast multiply + lane reduce ----
    y_col = jnp.sum(h * wout, axis=-1, keepdims=True) + bout      # (B, 1)
    y_row = _col_to_row(y_col, B)                                  # (1, B)  (single conversion)

    # ---- MultiheadAttention(embed_dim=1, num_heads=1) over L=B, transposed layout ----
    k_col = y_col * wk + bk                                        # (B, 1)
    v_col = y_col * wv + bv                                        # (B, 1)  out_proj weight folded in
    q_row = y_row * wq + bq                                        # (1, B)

    # scores^T[j, i] = k_j * q_i ; head_dim == 1 so the 1/sqrt(d) scale is 1.
    scores_t = k_col * q_row                                       # (B, B)  rank-1 outer product (VPU)
    m_row = jnp.max(scores_t, axis=0, keepdims=True)               # (1, B)  softmax over keys j
    e = jnp.exp(scores_t - m_row)                                  # EUP
    inv_l = pl.reciprocal(jnp.sum(e, axis=0, keepdims=True), approx=True)   # EUP
    # flash-style fold of 1/l into the value reduction; out_proj = + bo only.
    ao_row = jnp.sum(e * v_col, axis=0, keepdims=True) * inv_l + bo          # (1, B)

    # ---- residual + ReLU, lane-dense row write ----
    out_ref[...] = jnp.maximum(y_row + ao_row, 0.0)                # (1, B)


def att_m_forward(x, attn_params, w1, b1, s1, t1, w2, b2, s2, t2, w_out, b_out):
    """attn_params = [wq, wk, wv, bq, bk, bv, wo, bo] (MultiheadAttention with E=1)."""
    B, F_in = x.shape
    H1 = w1.shape[1]
    H2 = w2.shape[1]
    Hmax = max(H1, H2)

    # --- host-side precompute (done once per parameter set in a real model) ---
    w2f = s1.reshape(-1, 1) * w2                    # BN1 folded into W2
    b2f = b2 + t1 @ w2                              # (1, H2)
    woutf = s2.reshape(-1, 1) * w_out               # BN2 folded into W_out, (H2, 1)
    boutf = (b_out + t2 @ w_out).reshape(1)         # (1,)
    wout_row = woutf.reshape(1, H2)                 # row layout for the lane reduce

    wq, wk, wv, bq, bk, bv, wo, bo = (attn_params[i] for i in range(8))
    scal = jnp.stack(
        [wq, bq, wk, bk, wv * wo, bv * wo, bo, boutf[0]]).astype(jnp.float32)   # (8,)

    def pad_to(a, width):
        return jnp.pad(a, ((0, 0), (0, width - a.shape[1])))

    # Single packed VMEM parameter slab: bias/output rows first, weights at an
    # 8-aligned sublane offset.  One DMA instead of five.
    slab = jnp.concatenate([
        pad_to(b1.reshape(1, H1), Hmax),            # row 0
        pad_to(b2f.reshape(1, H2), Hmax),           # row 1
        pad_to(wout_row, Hmax),                     # row 2
        jnp.zeros((5, Hmax), jnp.float32),          # rows 3..7 (alignment pad)
        pad_to(w1, Hmax),                           # rows 8 .. 8+F_in
        pad_to(w2f, Hmax),                          # rows 8+F_in .. 8+F_in+H1
    ], axis=0).astype(jnp.float32)

    kernel = functools.partial(att_m_kernel, F_in, H1, H2)

    # advisory cost estimate so XLA schedules this tiny custom call sensibly
    cost = pl.CostEstimate(
        flops=int(2 * B * F_in * H1 + 2 * B * H1 * H2 + 2 * B * H2 + 8 * B * B + 16 * B),
        transcendentals=int(B * B + B),
        bytes_accessed=int(4 * (x.size + slab.size + scal.size + B)),
    )

    out_row = pl.pallas_call(
        kernel,
        out_shape=jax.ShapeDtypeStruct((1, B), jnp.float32),
        in_specs=[
            pl.BlockSpec(memory_space=pltpu.MemorySpace.SMEM),   # scalar params
            pl.BlockSpec(memory_space=pltpu.MemorySpace.VMEM),   # x
            pl.BlockSpec(memory_space=pltpu.MemorySpace.VMEM),   # packed param slab
        ],
        out_specs=pl.BlockSpec(memory_space=pltpu.MemorySpace.VMEM),
        cost_estimate=cost,
    )(scal, x.astype(jnp.float32), slab)

    # layout plumbing only: present the module's (B, 1) output shape
    return out_row.reshape(B, 1)


def reference(x, attn_params, w1, b1, s1, t1, w2, b2, s2, t2, w_out, b_out):
    """Pure-JAX reference of the original (un-folded) forward pass."""
    h = jnp.maximum(x @ w1 + b1, 0.0) * s1 + t1
    h = jnp.maximum(h @ w2 + b2, 0.0) * s2 + t2
    y = h @ w_out + b_out
    wq, wk, wv, bq, bk, bv, wo, bo = (attn_params[i] for i in range(8))
    q = y * wq + bq
    k = y * wk + bk
    v = y * wv + bv
    p = jax.nn.softmax(q @ k.T, axis=-1)
    ao = (p @ v) * wo + bo
    return jnp.maximum(y + ao, 0.0)


if __name__ == "__main__":
    # Shapes implied by ATT_M(in_features=16, num_nodes=[32, 32], out_features=1):
    # out_features must be 1 so the trunk output matches MultiheadAttention(embed_dim=1).
    B, F_IN, H1, H2, F_OUT = 8, 16, 32, 32, 1

    key = jax.random.PRNGKey(0)
    ks = jax.random.split(key, 12)

    def kaiming(k, fan_in, fan_out):
        # kaiming_normal_(nonlinearity='relu'): std = sqrt(2 / fan_in)
        return jax.random.normal(k, (fan_in, fan_out), jnp.float32) * np.sqrt(2.0 / fan_in)

    x = jax.random.normal(ks[0], (B, F_IN), jnp.float32)

    w1 = kaiming(ks[1], F_IN, H1)
    b1 = (jax.random.uniform(ks[2], (1, H1), jnp.float32) - 0.5) * (2.0 / np.sqrt(F_IN))
    w2 = kaiming(ks[3], H1, H2)
    b2 = (jax.random.uniform(ks[4], (1, H2), jnp.float32) - 0.5) * (2.0 / np.sqrt(H1))
    w_out = kaiming(ks[5], H2, F_OUT)
    b_out = (jax.random.uniform(ks[6], (1, F_OUT), jnp.float32) - 0.5) * (2.0 / np.sqrt(H2))

    # BatchNorm1d, eval mode, PyTorch default init -> per-feature scale/shift.
    eps = 1e-5
    def bn_fold(n):
        gamma = jnp.ones((1, n), jnp.float32)
        beta = jnp.zeros((1, n), jnp.float32)
        mean = jnp.zeros((1, n), jnp.float32)
        var = jnp.ones((1, n), jnp.float32)
        s = gamma / jnp.sqrt(var + eps)
        t = beta - mean * s
        return s, t
    s1, t1 = bn_fold(H1)
    s2, t2 = bn_fold(H2)

    # MultiheadAttention(embed_dim=1): in_proj (3x1), in_proj_bias (3,), out_proj 1x1 — all scalars.
    in_proj_w = jax.random.normal(ks[7], (3,), jnp.float32) * 0.5    # wq, wk, wv
    in_proj_b = jax.random.normal(ks[8], (3,), jnp.float32) * 0.1    # bq, bk, bv
    out_proj_w = jax.random.normal(ks[9], (1,), jnp.float32) * 0.5   # wo
    out_proj_b = jax.random.normal(ks[10], (1,), jnp.float32) * 0.1  # bo
    attn_params = jnp.concatenate([in_proj_w, in_proj_b, out_proj_w, out_proj_b]).astype(jnp.float32)

    out = att_m_forward(x, attn_params, w1, b1, s1, t1, w2, b2, s2, t2, w_out, b_out)
    out = jax.block_until_ready(out)

    ref = reference(x, attn_params, w1, b1, s1, t1, w2, b2, s2, t2, w_out, b_out)
    assert out.shape == (B, F_OUT)
    # Tolerance accounts for the EUP approximate reciprocal used for the softmax
    # normalization and the host-side BN/out_proj folding (rounding-equivalent only).
    np.testing.assert_allclose(np.asarray(out), np.asarray(ref), rtol=1e-3, atol=1e-3)
    print("KERNEL_OK")
</pallas_src>

<mosaic_0001>
module attributes {stable_mosaic.version = 11 : i64} {
  func.func @att_m_kernel(%arg0: memref<8xf32, #tpu.memory_space<smem>>, %arg1: memref<8x16xf32, #tpu.memory_space<vmem>>, %arg2: memref<56x32xf32, #tpu.memory_space<vmem>>, %arg3: memref<1x8xf32, #tpu.memory_space<vmem>>) attributes {dimension_semantics = [], scalar_prefetch = 0 : i64, scratch_operands = 0 : i64, tpu.core_type = #tpu.core_type<tc>} {
    %c0 = arith.constant 0 : index
    %c0_0 = arith.constant 0 : index
    %0 = vector.load %arg2[%c0, %c0_0] : memref<56x32xf32, #tpu.memory_space<vmem>>, vector<1x32xf32>
    %c1 = arith.constant 1 : index
    %c0_1 = arith.constant 0 : index
    %1 = vector.load %arg2[%c1, %c0_1] : memref<56x32xf32, #tpu.memory_space<vmem>>, vector<1x32xf32>
    %c2 = arith.constant 2 : index
    %c0_2 = arith.constant 0 : index
    %2 = vector.load %arg2[%c2, %c0_2] : memref<56x32xf32, #tpu.memory_space<vmem>>, vector<1x32xf32>
    %c8 = arith.constant 8 : index
    %c0_3 = arith.constant 0 : index
    %3 = vector.load %arg2[%c8, %c0_3] : memref<56x32xf32, #tpu.memory_space<vmem>>, vector<16x32xf32>
    %c24 = arith.constant 24 : index
    %c0_4 = arith.constant 0 : index
    %4 = vector.load %arg2[%c24, %c0_4] : memref<56x32xf32, #tpu.memory_space<vmem>>, vector<32x32xf32>
    %c0_5 = arith.constant 0 : index
    %5 = memref.load %arg0[%c0_5] : memref<8xf32, #tpu.memory_space<smem>>
    %c1_6 = arith.constant 1 : index
    %6 = memref.load %arg0[%c1_6] : memref<8xf32, #tpu.memory_space<smem>>
    %c2_7 = arith.constant 2 : index
    %7 = memref.load %arg0[%c2_7] : memref<8xf32, #tpu.memory_space<smem>>
    %c3 = arith.constant 3 : index
    %8 = memref.load %arg0[%c3] : memref<8xf32, #tpu.memory_space<smem>>
    %c4 = arith.constant 4 : index
    %9 = memref.load %arg0[%c4] : memref<8xf32, #tpu.memory_space<smem>>
    %c5 = arith.constant 5 : index
    %10 = memref.load %arg0[%c5] : memref<8xf32, #tpu.memory_space<smem>>
    %c6 = arith.constant 6 : index
    %11 = memref.load %arg0[%c6] : memref<8xf32, #tpu.memory_space<smem>>
    %c7 = arith.constant 7 : index
    %12 = memref.load %arg0[%c7] : memref<8xf32, #tpu.memory_space<smem>>
    %c0_8 = arith.constant 0 : index
    %c0_9 = arith.constant 0 : index
    %13 = vector.load %arg1[%c0_8, %c0_9] : memref<8x16xf32, #tpu.memory_space<vmem>>, vector<8x16xf32>
    %cst = arith.constant dense<0.000000e+00> : vector<8x32xf32>
    %14 = tpu.matmul %13, %3, %cst {dimension_numbers = #tpu.dot_dimension_numbers<[1], [0], [0], [1], [0, 0, 1, 1], [], []>} : vector<8x16xf32>, vector<16x32xf32>, vector<8x32xf32> -> vector<8x32xf32>
    %15 = vector.broadcast %0 : vector<1x32xf32> to vector<8x32xf32>
    %16 = arith.addf %14, %15 : vector<8x32xf32>
    %cst_10 = arith.constant 0.000000e+00 : f32
    %17 = vector.broadcast %cst_10 : f32 to vector<8x32xf32>
    %18 = arith.maximumf %16, %17 : vector<8x32xf32>
    %cst_11 = arith.constant dense<0.000000e+00> : vector<8x32xf32>
    %19 = tpu.matmul %18, %4, %cst_11 {dimension_numbers = #tpu.dot_dimension_numbers<[1], [0], [0], [1], [0, 0, 1, 1], [], []>} : vector<8x32xf32>, vector<32x32xf32>, vector<8x32xf32> -> vector<8x32xf32>
    %20 = vector.broadcast %1 : vector<1x32xf32> to vector<8x32xf32>
    %21 = arith.addf %19, %20 : vector<8x32xf32>
    %cst_12 = arith.constant 0.000000e+00 : f32
    %22 = vector.broadcast %cst_12 : f32 to vector<8x32xf32>
    %23 = arith.maximumf %21, %22 : vector<8x32xf32>
    %24 = vector.broadcast %2 : vector<1x32xf32> to vector<8x32xf32>
    %25 = arith.mulf %23, %24 : vector<8x32xf32>
    %cst_13 = arith.constant dense<0.000000e+00> : vector<8xf32>
    %26 = vector.multi_reduction <add>, %25, %cst_13 [1] : vector<8x32xf32> to vector<8xf32>
    %27 = vector.shape_cast %26 : vector<8xf32> to vector<8x1xf32>
    %28 = vector.broadcast %12 : f32 to vector<8x1xf32>
    %29 = arith.addf %27, %28 : vector<8x1xf32>
    %30 = tpu.iota {dimensions = array<i32: 0>} : vector<8x8xi32>
    %31 = tpu.iota {dimensions = array<i32: 1>} : vector<8x8xi32>
    %32 = arith.cmpi eq, %30, %31 : vector<8x8xi32>
    %33 = arith.extui %32 : vector<8x8xi1> to vector<8x8xi32>
    %34 = arith.sitofp %33 : vector<8x8xi32> to vector<8x8xf32>
    %35 = vector.broadcast %29 : vector<8x1xf32> to vector<8x8xf32>
    %36 = arith.mulf %35, %34 : vector<8x8xf32>
    %cst_14 = arith.constant dense<0.000000e+00> : vector<8xf32>
    %37 = vector.multi_reduction <add>, %36, %cst_14 [0] : vector<8x8xf32> to vector<8xf32>
    %38 = vector.shape_cast %37 : vector<8xf32> to vector<1x8xf32>
    %39 = vector.broadcast %7 : f32 to vector<8x1xf32>
    %40 = arith.mulf %29, %39 : vector<8x1xf32>
    %41 = vector.broadcast %8 : f32 to vector<8x1xf32>
    %42 = arith.addf %40, %41 : vector<8x1xf32>
    %43 = vector.broadcast %9 : f32 to vector<8x1xf32>
    %44 = arith.mulf %29, %43 : vector<8x1xf32>
    %45 = vector.broadcast %10 : f32 to vector<8x1xf32>
    %46 = arith.addf %44, %45 : vector<8x1xf32>
    %47 = vector.broadcast %5 : f32 to vector<1x8xf32>
    %48 = arith.mulf %38, %47 : vector<1x8xf32>
    %49 = vector.broadcast %6 : f32 to vector<1x8xf32>
    %50 = arith.addf %48, %49 : vector<1x8xf32>
    %51 = vector.broadcast %42 : vector<8x1xf32> to vector<8x8xf32>
    %52 = vector.broadcast %50 : vector<1x8xf32> to vector<8x8xf32>
    %53 = arith.mulf %51, %52 : vector<8x8xf32>
    %cst_15 = arith.constant dense<0xFF800000> : vector<8xf32>
    %54 = vector.multi_reduction <maximumf>, %53, %cst_15 [0] : vector<8x8xf32> to vector<8xf32>
    %55 = vector.shape_cast %54 : vector<8xf32> to vector<1x8xf32>
    %56 = vector.broadcast %55 : vector<1x8xf32> to vector<8x8xf32>
    %57 = arith.subf %53, %56 : vector<8x8xf32>
    %58 = math.exp %57 : vector<8x8xf32>
    %cst_16 = arith.constant dense<0.000000e+00> : vector<8xf32>
    %59 = vector.multi_reduction <add>, %58, %cst_16 [0] : vector<8x8xf32> to vector<8xf32>
    %60 = vector.shape_cast %59 : vector<8xf32> to vector<1x8xf32>
    %61 = tpu.reciprocal %60 {approx = true} : vector<1x8xf32> -> vector<1x8xf32>
    %62 = vector.broadcast %46 : vector<8x1xf32> to vector<8x8xf32>
    %63 = arith.mulf %58, %62 : vector<8x8xf32>
    %cst_17 = arith.constant dense<0.000000e+00> : vector<8xf32>
    %64 = vector.multi_reduction <add>, %63, %cst_17 [0] : vector<8x8xf32> to vector<8xf32>
    %65 = vector.shape_cast %64 : vector<8xf32> to vector<1x8xf32>
    %66 = arith.mulf %65, %61 : vector<1x8xf32>
    %67 = vector.broadcast %11 : f32 to vector<1x8xf32>
    %68 = arith.addf %66, %67 : vector<1x8xf32>
    %69 = arith.addf %38, %68 : vector<1x8xf32>
    %cst_18 = arith.constant 0.000000e+00 : f32
    %70 = vector.broadcast %cst_18 : f32 to vector<1x8xf32>
    %71 = arith.maximumf %69, %70 : vector<1x8xf32>
    %c0_19 = arith.constant 0 : index
    %c0_20 = arith.constant 0 : index
    %72 = vector.load %arg3[%c0_19, %c0_20] : memref<1x8xf32, #tpu.memory_space<vmem>>, vector<1x8xf32>
    tpu.vector_store %arg3[%c0_19, %c0_20], %71 {strides = array<i32>} : memref<1x8xf32, #tpu.memory_space<vmem>>, vector<1x8xf32>,
    return
  }
}

</mosaic_0001>

<llo_original>
// kernel: tpu_custom_call.1
$region0: #{tpu_custom_call.1}
  #allocation0 [shape = 'u32[]', space=smem, size = 0x4, offset = 0x4, fixed_abs, tag = 'smem constant byte address 0x4 - core index']
  #allocation1 [shape = 'u32[144,128]{1,0:T(1,128)}', space=vmem, size = 0x12000, scoped, tag = 'internal scratch']
  %s0 = inlined_call_operand.vmem [shape: f32[8], index: 0, kind: input, shape index: {}]
  %s1 = inlined_call_operand.vmem [shape: f32[8,16], index: 1, kind: input, shape index: {}]
  %s2 = inlined_call_operand.vmem [shape: f32[56,32], index: 2, kind: input, shape index: {}]
  %s3 = inlined_call_operand.hbm [shape: f32[1,8], index: 3, kind: output, shape index: {}]
  %s4 = sld [smem:[#allocation0]]
  $region26: #{tpu_custom_call.1} parent=0
    _
  %s6 = ssub.s32 1, %s4
  %s7 = scalar_select 0, %s6, %s4
  $region1: #{tpu_custom_call.1} parent=0
    #allocation2 [shape = 'u8[512]{0}', space=smem, size = 0x200, scoped, tag = 'input window, operand 0, single buffered']
    #allocation3 [shape = 's32[1]{0}', space=sflag, size = 0x4, scoped, tag = 'scoped memory for tpu_custom_call.1']
    #allocation4 [shape = 's32[1]{0}', space=sflag, size = 0x4, scoped, tag = 'scoped memory for tpu_custom_call.1']
    #allocation5 [shape = 'u8[512]{0}', space=vmem, size = 0x400, scoped, tag = 'output window, operand 0, single buffered']
    %8 = vsyncpa [#allocation4], 0
    %9 = vsyncpa [#allocation3], 0
    // Predicated region
    $region2: #{tpu_custom_call.1} parent=1 // pred_check
      _
    $region3: #{tpu_custom_call.1} parent=1 // pred_check_branch
      %11 = sbr.rel (0) target = $region5
    $region4: #{tpu_custom_call.1} parent=1 // pred_region
      %s13 = ssub.s32 16, 16
      %14 = vsyncadd [#allocation4], %s13
      %s16 = sshll.u32 %s0, 4
      %s17 = int_to_ptr.vmem [resolvable:$true] %s16
      %19 = dma.vmem_to_smem %s17, 16, [#allocation2], [#allocation4]
    $region5: #{tpu_custom_call.1} parent=1 // pred_fallthru
      _
    // Predicated region
    $region6: #{tpu_custom_call.1} parent=1 // pred_check
      _
    $region7: #{tpu_custom_call.1} parent=1 // pred_check_branch
      %21 = sbr.rel (0) target = $region9
    $region8: #{tpu_custom_call.1} parent=1 // pred_region
      _
    $region9: #{tpu_custom_call.1} parent=1 // pred_fallthru
      _
    // Predicated region
    $region10: #{tpu_custom_call.1} parent=1 // pred_check
      _
    $region11: #{tpu_custom_call.1} parent=1 // pred_check_branch
      %23 = sbr.rel (0) target = $region13
    $region12: #{tpu_custom_call.1} parent=1 // pred_region
      _
    $region13: #{tpu_custom_call.1} parent=1 // pred_fallthru
      _
    // Predicated region
    $region14: #{tpu_custom_call.1} parent=1 // pred_check
      _
    $region15: #{tpu_custom_call.1} parent=1 // pred_check_branch
      %25 = sbr.rel (0) target = $region17
    $region16: #{tpu_custom_call.1} parent=1 // pred_region
      %26 = dma.done [#allocation4], 16
    $region17: #{tpu_custom_call.1} parent=1 // pred_fallthru
      _
    %27 = sfence
    %v28 = vld [vmem:[%s2] sm:$0x1]
    %v29 = vld [vmem:[%s2 + $0x1] sm:$0x1]
    %v30 = vld [vmem:[%s2 + $0x2] sm:$0x1]
    %v31 = vld [vmem:[%s2 + $0x8] sm:$0xff]
    %v32 = vld [vmem:[%s2 + $0x10] sm:$0xff]
    %v33 = vld [vmem:[%s2 + $0x18] sm:$0xff]
    %v34 = vld [vmem:[%s2 + $0x20] sm:$0xff]
    %v35 = vld [vmem:[%s2 + $0x28] sm:$0xff]
    %v36 = vld [vmem:[%s2 + $0x30] sm:$0xff]
    %s37 = sld [smem:[#allocation2]]
    %s38 = sld [smem:[#allocation2 + $0x1]]
    %s39 = sld [smem:[#allocation2 + $0x2]]
    %s40 = sld [smem:[#allocation2 + $0x3]]
    %s41 = sld [smem:[#allocation2 + $0x4]]
    %s42 = sld [smem:[#allocation2 + $0x5]]
    %s43 = sld [smem:[#allocation2 + $0x6]]
    %s44 = sld [smem:[#allocation2 + $0x7]]
    %v45 = vld [vmem:[%s1] sm:$0xff]
    %v46 = vlaneseq
    %v47 = vshrl.u32 %v46, 7
    %v48 = vsub.s32 0, %v47
    %v49 = vrot.slane %v28, %v48
    %vm50 = vcmask 130048
    %v52 = vsel %vm50, %v45, 0
    %54 = vmatprep.subr.mxu0 0.0
    %55 = vmatpush1.msra.mxu0 %v31
    %56 = vmatprep.subr.mxu0 0.0
    %57 = vmatpush1.msra.mxu0 %v32
    %58 = vmatprep.subr.mxu0 0.0
    %59 = vmatpush1.msra.mxu0 0.0
    %60 = vmatprep.subr.mxu0 0.0
    %61 = vmatpush1.msra.mxu0 0.0
    %62 = vmatprep.subr.mxu0 0.0
    %63 = vmatpush1.msra.mxu0 0.0
    %64 = vmatprep.subr.mxu0 0.0
    %65 = vmatpush1.msra.mxu0 0.0
    %66 = vmatprep.subr.mxu0 0.0
    %67 = vmatpush1.msra.mxu0 0.0
    %68 = vmatprep.subr.mxu0 0.0
    %69 = vmatpush1.msra.mxu0 0.0
    %70 = vmatprep.subr.mxu0 0.0
    %71 = vmatpush1.msra.mxu0 0.0
    %72 = vmatprep.subr.mxu0 0.0
    %73 = vmatpush1.msra.mxu0 0.0
    %74 = vmatprep.subr.mxu0 0.0
    %75 = vmatpush1.msra.mxu0 0.0
    %76 = vmatprep.subr.mxu0 0.0
    %77 = vmatpush1.msra.mxu0 0.0
    %78 = vmatprep.subr.mxu0 0.0
    %79 = vmatpush1.msra.mxu0 0.0
    %80 = vmatprep.subr.mxu0 0.0
    %81 = vmatpush1.msra.mxu0 0.0
    %82 = vmatprep.subr.mxu0 0.0
    %83 = vmatpush1.msra.mxu0 0.0
    %84 = vmatprep.subr.mxu0 0.0
    %85 = vmatpush1.msra.mxu0 0.0
    %86 = vmatprep.subr.mxu0 0.0
    %87 = vmatpush1.msra.mxu0 0.0
    %88 = vmatprep.subr.mxu0 0.0
    %89 = vmatpush1.msra.mxu0 0.0
    %90 = vmatprep.subr.mxu0 0.0
    %91 = vmatpush1.msra.mxu0 0.0
    %92 = vmatprep.subr.mxu0 0.0
    %93 = vmatpush1.msra.mxu0 0.0
    %94 = vmatprep.subr.mxu0 0.0
    %95 = vmatpush1.msra.mxu0 0.0
    %96 = vmatprep.subr.mxu0 0.0
    %97 = vmatpush1.msra.mxu0 0.0
    %98 = vmatprep.subr.mxu0 0.0
    %99 = vmatpush1.msra.mxu0 0.0
    %100 = vmatprep.subr.mxu0 0.0
    %101 = vmatpush1.msra.mxu0 0.0
    %102 = vmatprep.subr.mxu0 0.0
    %103 = vmatpush1.msra.mxu0 0.0
    %104 = vmatprep.subr.mxu0 0.0
    %105 = vmatpush1.msra.mxu0 0.0
    %106 = vmatprep.subr.mxu0 0.0
    %107 = vmatpush1.msra.mxu0 0.0
    %108 = vmatprep.subr.mxu0 0.0
    %109 = vmatpush1.msra.mxu0 0.0
    %110 = vmatprep.subr.mxu0 0.0
    %111 = vmatpush1.msra.mxu0 0.0
    %112 = vmatprep.subr.mxu0 0.0
    %113 = vmatpush1.msra.mxu0 0.0
    %114 = vmatprep.subr.mxu0 0.0
    %115 = vmatpush1.msra.mxu0 0.0
    %116 = vmatprep.subr.mxu0 0.0
    %117 = vmatpush1.msra.mxu0 0.0
    %118 = vmatprep.mubr.f32.mxu0 0.0
    %119 = vmatmul.mubr.f32.gmra.mrb[0].mxu0 %v52
    %v120 = vpop.f32.mrb[0].mxu0
    %v121 = vadd.f32 %v49, %v120
    %v122 = vpop.f32.mrb[0].mxu0
    %123 = vdwg.mxu0
    %v124 = vmax.f32 %v121, 0.0
    %v125 = vlaneseq
    %v126 = vshrl.u32 %v125, 7
    %v127 = vsub.s32 0, %v126
    %v128 = vrot.slane %v29, %v127
    %vm129 = vcmask 261120
    %v131 = vsel %vm129, %v124, 0
    %133 = vmatprep.subr.mxu0 0.0
    %134 = vmatpush1.msra.mxu0 %v33
    %135 = vmatprep.subr.mxu0 0.0
    %136 = vmatpush1.msra.mxu0 %v34
    %137 = vmatprep.subr.mxu0 0.0
    %138 = vmatpush1.msra.mxu0 %v35
    %139 = vmatprep.subr.mxu0 0.0
    %140 = vmatpush1.msra.mxu0 %v36
    %141 = vmatprep.subr.mxu0 0.0
    %142 = vmatpush1.msra.mxu0 0.0
    %143 = vmatprep.subr.mxu0 0.0
    %144 = vmatpush1.msra.mxu0 0.0
    %145 = vmatprep.subr.mxu0 0.0
    %146 = vmatpush1.msra.mxu0 0.0
    %147 = vmatprep.subr.mxu0 0.0
    %148 = vmatpush1.msra.mxu0 0.0
    %149 = vmatprep.subr.mxu0 0.0
    %150 = vmatpush1.msra.mxu0 0.0
    %151 = vmatprep.subr.mxu0 0.0
    %152 = vmatpush1.msra.mxu0 0.0
    %153 = vmatprep.subr.mxu0 0.0
    %154 = vmatpush1.msra.mxu0 0.0
    %155 = vmatprep.subr.mxu0 0.0
    %156 = vmatpush1.msra.mxu0 0.0
    %157 = vmatprep.subr.mxu0 0.0
    %158 = vmatpush1.msra.mxu0 0.0
    %159 = vmatprep.subr.mxu0 0.0
    %160 = vmatpush1.msra.mxu0 0.0
    %161 = vmatprep.subr.mxu0 0.0
    %162 = vmatpush1.msra.mxu0 0.0
    %163 = vmatprep.subr.mxu0 0.0
    %164 = vmatpush1.msra.mxu0 0.0
    %165 = vmatprep.subr.mxu0 0.0
    %166 = vmatpush1.msra.mxu0 0.0
    %167 = vmatprep.subr.mxu0 0.0
    %168 = vmatpush1.msra.mxu0 0.0
    %169 = vmatprep.subr.mxu0 0.0
    %170 = vmatpush1.msra.mxu0 0.0
    %171 = vmatprep.subr.mxu0 0.0
    %172 = vmatpush1.msra.mxu0 0.0
    %173 = vmatprep.subr.mxu0 0.0
    %174 = vmatpush1.msra.mxu0 0.0
    %175 = vmatprep.subr.mxu0 0.0
    %176 = vmatpush1.msra.mxu0 0.0
    %177 = vmatprep.subr.mxu0 0.0
    %178 = vmatpush1.msra.mxu0 0.0
    %179 = vmatprep.subr.mxu0 0.0
    %180 = vmatpush1.msra.mxu0 0.0
    %181 = vmatprep.subr.mxu0 0.0
    %182 = vmatpush1.msra.mxu0 0.0
    %183 = vmatprep.subr.mxu0 0.0
    %184 = vmatpush1.msra.mxu0 0.0
    %185 = vmatprep.subr.mxu0 0.0
    %186 = vmatpush1.msra.mxu0 0.0
    %187 = vmatprep.subr.mxu0 0.0
    %188 = vmatpush1.msra.mxu0 0.0
    %189 = vmatprep.subr.mxu0 0.0
    %190 = vmatpush1.msra.mxu0 0.0
    %191 = vmatprep.subr.mxu0 0.0
    %192 = vmatpush1.msra.mxu0 0.0
    %193 = vmatprep.subr.mxu0 0.0
    %194 = vmatpush1.msra.mxu0 0.0
    %195 = vmatprep.subr.mxu0 0.0
    %196 = vmatpush1.msra.mxu0 0.0
    %197 = vmatprep.mubr.f32.mxu0 0.0
    %198 = vmatmul.mubr.f32.gmra.mrb[0].mxu0 %v131
    %v199 = vpop.f32.mrb[0].mxu0
    %v200 = vadd.f32 %v128, %v199
    %v201 = vpop.f32.mrb[0].mxu0
    %202 = vdwg.mxu0
    %v203 = vmax.f32 %v200, 0.0
    %v204 = vlaneseq
    %v205 = vshrl.u32 %v204, 7
    %v206 = vsub.s32 0, %v205
    %v207 = vrot.slane %v30, %v206
    %v208 = vmul.f32 %v203, %v207
    %v209 = vsel %vm129, %v208, 0.0
    %210 = vadd.xlane.f32.xlu0 %v209
    %v211 = vpop.xlane.xlu0 %210
    %v212 = vstv %s44
    %v213 = vadd.f32 %v211, %v212
    %v214 = vlaneseq
    %v215 = vshrl.u32 %v214, 7
    %v216 = vlaneseq
    %v217 = vand.u32 %v216, 127
    %vm218 = vcmp.eq.s32.totalorder %v215, %v217
    %v219 = vsel %vm218, 1, 0
    %v220 = vcvt.s32.f32 %v219
    %v221 = vmul.f32 %v213, %v220
    %vm222 = vcmask 64512
    %v223 = vsel %vm222, %v221, 0.0
    %v224 = vrot.slane %v223, 4
    %v225 = vadd.f32 %v223, %v224
    %v226 = vrot.slane %v225, 2
    %v227 = vadd.f32 %v225, %v226
    %v228 = vrot.slane %v227, 1
    %v229 = vadd.f32 %v227, %v228
    %v230 = vstv %s39
    %v231 = vmul.f32 %v213, %v230
    %v232 = vstv %s40
    %v233 = vadd.f32 %v231, %v232
    %v234 = vstv %s41
    %v235 = vmul.f32 %v213, %v234
    %v236 = vstv %s42
    %v237 = vadd.f32 %v235, %v236
    %v238 = vstv %s37
    %v239 = vmul.f32 %v229, %v238
    %v240 = vstv %s38
    %v241 = vadd.f32 %v239, %v240
    %v242 = vmul.f32 %v233, %v241
    %v243 = vsel %vm222, %v242, -inf
    %v244 = vrot.slane %v243, 4
    %v245 = vmax.f32 %v243, %v244
    %v246 = vrot.slane %v245, 2
    %v247 = vmax.f32 %v245, %v246
    %v248 = vrot.slane %v247, 1
    %v249 = vmax.f32 %v247, %v248
    %v250 = vsub.f32 %v242, %v249
    %v251 = vmul.f32 %v250, 1.442695
    %v252 = vpow.pop %v251
    %v253 = vsel %vm222, %v252, 0.0
    %v254 = vrot.slane %v253, 4
    %v255 = vadd.f32 %v253, %v254
    %v256 = vrot.slane %v255, 2
    %v257 = vadd.f32 %v255, %v256
    %v258 = vrot.slane %v257, 1
    %v259 = vadd.f32 %v257, %v258
    %v260 = vrcp.pop %v259
    %v261 = vmul.f32 %v252, %v237
    %v262 = vsel %vm222, %v261, 0.0
    %v263 = vrot.slane %v262, 4
    %v264 = vadd.f32 %v262, %v263
    %v265 = vrot.slane %v264, 2
    %v266 = vadd.f32 %v264, %v265
    %v267 = vrot.slane %v266, 1
    %v268 = vadd.f32 %v266, %v267
    %v269 = vmul.f32 %v268, %v260
    %v270 = vstv %s43
    %v271 = vadd.f32 %v269, %v270
    %v272 = vadd.f32 %v229, %v271
    %v273 = vmax.f32 %v272, 0.0
    %vm274 = vcmask 57344
    %275 = vst.msk [vmem:[#allocation5] sm:$0x1] %vm274, %v273
    // Predicated region
    $region18: #{tpu_custom_call.1} parent=1 // pred_check
      _
    $region19: #{tpu_custom_call.1} parent=1 // pred_check_branch
      %277 = sbr.rel (0) target = $region21
    $region20: #{tpu_custom_call.1} parent=1 // pred_region
      %s279 = ssub.s32 16, 16
      %280 = vsyncadd [#allocation3], %s279
      %s282 = sshll.u32 [#allocation5], 4
      %s283 = int_to_ptr.vmem [resolvable:$true] %s282
      %285 = dma.vmem_to_hbm [thread:$0]  %s283, 16, %s3, [#allocation3]
    $region21: #{tpu_custom_call.1} parent=1 // pred_fallthru
      _
    // Predicated region
    $region22: #{tpu_custom_call.1} parent=1 // pred_check
      _
    $region23: #{tpu_custom_call.1} parent=1 // pred_check_branch
      %287 = sbr.rel (0) target = $region25
    $region24: #{tpu_custom_call.1} parent=1 // pred_region
      %288 = dma.done [#allocation3], 16
    $region25: #{tpu_custom_call.1} parent=1 // pred_fallthru
      _
    %289 = vsyncpa [#allocation3], 1
    %290 = vsyncpa [#allocation4], 1

</llo_original>
